<compile_context>
chip_gen: v7x
topology: tpu7x:2x2x1
jax: 0.10.0
libtpu: 0.0.40
codegen_flags: <defaults>
</compile_context>

<pallas_src>
import jax
import jax.numpy as jnp
from jax.experimental import pallas as pl
from jax.experimental.pallas import tpu as pltpu


def fnn_kernel(ids_ref,                      # scalar prefetch: (Bp*C,) int32 in SMEM
               emb_ref,                      # (ntoken, E)   f32   resident
               s1_ref,                       # (C, E)        f32   resident (lf1 renorm)
               w1_ref,                       # (C*E, Hp)     bf16  resident
               b1_ref,                       # (1, Hp)       f32   resident
               s2_ref,                       # (1, Hp)       f32   resident (lf2 renorm)
               w2_ref,                       # (Hp, tv)      bf16  streamed over vocab
               b2_ref,                       # (1, tv)       f32   streamed over vocab
               out_ref,                      # (tb, Vp)      f32   resident per batch tile
               x_scr,                        # (C*tb, E)     f32   gathered embeddings
               h_scr,                        # (tb, Hp)      bf16  scaled hidden
               m_scr, l_scr):                # (tb, 1)       f32   online logsumexp state
    i = pl.program_id(0)                     # batch-tile index  ("parallel")
    j = pl.program_id(1)                     # vocab-tile index  ("arbitrary")
    nv = pl.num_programs(1)

    E = emb_ref.shape[1]
    C = w1_ref.shape[0] // E
    tb = h_scr.shape[0]
    tv = w2_ref.shape[1]

    # ---- first vocab tile of a batch tile: gather, first matmul, init state ----
    @pl.when(j == 0)
    def _start_batch_tile():
        base = i * tb

        @pl.loop(0, tb)
        def _gather(r):
            row = (base + r) * C
            for c in range(C):                       # static unroll, C is small
                tok = ids_ref[row + c]
                x_scr[pl.ds(c * tb + r, 1), :] = emb_ref[pl.ds(tok, 1), :]

        # a = (x * s1) @ w1t + b1, accumulated per context slot.
        # (s1 is the folded max_norm_ scale of lf1: scaling x columns == scaling
        #  the matching rows of w1t.)
        a = jnp.zeros((tb, w1_ref.shape[1]), jnp.float32)
        for c in range(C):                           # static unroll
            xc = (x_scr[c * tb:(c + 1) * tb, :] * s1_ref[c:c + 1, :]).astype(jnp.bfloat16)
            a = a + jnp.dot(xc, w1_ref[c * E:(c + 1) * E, :],
                            preferred_element_type=jnp.float32)
        h = jnp.tanh(a + b1_ref[...])                        # f32 tanh (v5e-safe)
        h_scr[...] = (h * s2_ref[...]).astype(jnp.bfloat16)  # fold lf2 max_norm scale

        m_scr[...] = jnp.full_like(m_scr, -jnp.inf)
        l_scr[...] = jnp.zeros_like(l_scr)

    # ---- second matmul for this vocab tile + online logsumexp update ----
    logits = jnp.dot(h_scr[...], w2_ref[...],
                     preferred_element_type=jnp.float32) + b2_ref[...]

    m_old = m_scr[...]
    m_new = jnp.maximum(m_old, jnp.max(logits, axis=-1, keepdims=True))
    l_scr[...] = (l_scr[...] * jnp.exp(m_old - m_new)
                  + jnp.sum(jnp.exp(logits - m_new), axis=-1, keepdims=True))
    m_scr[...] = m_new

    col = pl.multiple_of(j * tv, tv)
    out_ref[:, pl.ds(col, tv)] = logits              # park raw logits in resident block

    # ---- last vocab tile: log_softmax finalize ----
    @pl.when(j == nv - 1)
    def _finalize():
        lse = m_scr[...] + jnp.log(l_scr[...])
        out_ref[...] = out_ref[...] - lse


# ----------------------------------------------------------------------------- host side


def _round_up(x, m):
    return (x + m - 1) // m * m


def _max_norm_scale(w):
    """PyTorch max_norm_ on a (out, in) weight: per-column (dim=0) multiplier
    desired/norm (== 1.0 unless the column norm exceeds 3)."""
    norm = jnp.sqrt(jnp.sum(w.astype(jnp.float32) ** 2, axis=0))
    norm = jnp.maximum(norm, 2.0)
    desired = jnp.minimum(norm, 3.0)
    return desired / norm


def prepare_params(emb, w1, b1, w2, b2, context, ninp):
    """One-time weight prep (hoisted out of the per-forward path).

    max_norm_ is idempotent in eval mode, so per-column scales computed from
    the original weights reproduce the module's weights exactly; the scales are
    applied in-kernel.  Hidden dim and vocab dim are padded to 128-lane
    multiples (padded vocab bias = -1e30 so those columns vanish from softmax).
    """
    nhid, in_feat = w1.shape
    ntoken, nh2 = w2.shape
    assert in_feat == context * ninp and nh2 == nhid
    h_pad = _round_up(nhid, 128)
    v_pad = _round_up(ntoken, 128)

    s1 = _max_norm_scale(w1).reshape(context, ninp)                       # (C, E)
    s2 = jnp.concatenate(
        [_max_norm_scale(w2), jnp.ones((h_pad - nhid,), jnp.float32)]
    ).reshape(1, h_pad)                                                   # (1, Hp)

    w1t = jnp.pad(w1.T, ((0, 0), (0, h_pad - nhid))).astype(jnp.bfloat16)  # (C*E, Hp)
    w2t = jnp.pad(w2.T, ((0, h_pad - nhid), (0, v_pad - ntoken))
                  ).astype(jnp.bfloat16)                                   # (Hp, Vp)
    b1p = jnp.pad(b1, (0, h_pad - nhid)).reshape(1, h_pad).astype(jnp.float32)
    b2p = jnp.pad(b2.astype(jnp.float32), (0, v_pad - ntoken),
                  constant_values=-1e30).reshape(1, v_pad)

    return dict(emb=emb.astype(jnp.float32), s1=s1, w1t=w1t, b1=b1p,
                s2=s2, w2t=w2t, b2=b2p, ntoken=int(ntoken))


def fnn_forward(token_ids, params, *, batch_tile=None, vocab_tile=None,
                vmem_limit_bytes=48 * 1024 * 1024):
    """token_ids: (B, context) int. Returns log-probs (B, ntoken) float32."""
    B, C = token_ids.shape
    ntoken = params["ntoken"]
    n_rows, E = params["emb"].shape
    in_feat, h_pad = params["w1t"].shape
    Vp = params["w2t"].shape[1]
    assert in_feat == C * E

    tb = batch_tile if batch_tile is not None else min(256, _round_up(B, 8))
    tb = _round_up(tb, 8)
    Bp = _round_up(B, tb)
    tv = vocab_tile if vocab_tile is not None else next(
        t for t in (2048, 1024, 512, 256, 128) if Vp % t == 0)
    assert Vp % tv == 0 and tv % 128 == 0

    ids = token_ids.astype(jnp.int32)
    if Bp != B:
        ids = jnp.pad(ids, ((0, Bp - B), (0, 0)))          # pad rows use token 0
    ids = ids.reshape(-1)                                   # 1-D avoids SMEM 2-D padding

    grid = (Bp // tb, Vp // tv)

    cost = pl.CostEstimate(
        flops=int(2 * Bp * (in_feat * h_pad + h_pad * Vp)),
        transcendentals=int(Bp * (h_pad + Vp)),
        bytes_accessed=int((params["w1t"].size + params["w2t"].size) * 2
                           + (params["emb"].size + Bp * Vp) * 4 + ids.size * 4),
    )

    out = pl.pallas_call(
        fnn_kernel,
        out_shape=jax.ShapeDtypeStruct((Bp, Vp), jnp.float32),
        grid_spec=pltpu.PrefetchScalarGridSpec(
            num_scalar_prefetch=1,
            grid=grid,
            in_specs=[
                pl.BlockSpec((n_rows, E), lambda i, j, tok: (0, 0)),       # emb (resident)
                pl.BlockSpec((C, E), lambda i, j, tok: (0, 0)),            # s1
                pl.BlockSpec((in_feat, h_pad), lambda i, j, tok: (0, 0)),  # w1t (resident)
                pl.BlockSpec((1, h_pad), lambda i, j, tok: (0, 0)),        # b1
                pl.BlockSpec((1, h_pad), lambda i, j, tok: (0, 0)),        # s2
                pl.BlockSpec((h_pad, tv), lambda i, j, tok: (0, j)),       # w2t (vocab-tiled)
                pl.BlockSpec((1, tv), lambda i, j, tok: (0, j)),           # b2
            ],
            out_specs=pl.BlockSpec((tb, Vp), lambda i, j, tok: (i, 0)),
            scratch_shapes=[
                pltpu.VMEM((C * tb, E), jnp.float32),    # gathered embeddings
                pltpu.VMEM((tb, h_pad), jnp.bfloat16),   # scaled hidden activations
                pltpu.VMEM((tb, 1), jnp.float32),        # running max
                pltpu.VMEM((tb, 1), jnp.float32),        # running sum-of-exp
            ],
        ),
        compiler_params=pltpu.CompilerParams(
            dimension_semantics=("parallel", "arbitrary"),
            vmem_limit_bytes=vmem_limit_bytes,           # headroom under v7x's 64 MiB
        ),
        cost_estimate=cost,
    )(ids, params["emb"], params["s1"], params["w1t"], params["b1"],
      params["s2"], params["w2t"], params["b2"])

    return out[:B, :ntoken]


# ----------------------------------------------------------------------------- reference


def _max_norm_apply(w):
    norm = jnp.sqrt(jnp.sum(w * w, axis=0, keepdims=True))
    norm = jnp.maximum(norm, 2.0)
    desired = jnp.minimum(norm, 3.0)
    return w * (desired / norm)


def fnn_reference(token_ids, emb, w1, b1, w2, b2, context, ninp):
    B = token_ids.shape[0]
    x = emb[token_ids.reshape(-1)].reshape(B, context * ninp)
    a = x @ _max_norm_apply(w1).T + b1
    h = jnp.tanh(a)
    logits = h @ _max_norm_apply(w2).T + b2
    return jax.nn.log_softmax(logits, axis=1)


if __name__ == "__main__":
    # TODO(synk): dropinp/drophid are identity (eval mode); sharing=True (lf3) not implemented.

    def run_case(case_idx, ntoken, ninp, nhid, context, batch, **tiles):
        key = jax.random.fold_in(jax.random.PRNGKey(0), case_idx)
        k_emb, k_w1, k_b1, k_w2, k_b2, k_in = jax.random.split(key, 6)

        # Weights scaled so max_norm_ actually clamps some columns.
        emb = jax.random.normal(k_emb, (ntoken, ninp), jnp.float32) * 0.5
        w1 = jax.random.normal(k_w1, (nhid, ninp * context), jnp.float32) * 0.5
        b1 = jax.random.normal(k_b1, (nhid,), jnp.float32) * 0.1
        w2 = jax.random.normal(k_w2, (ntoken, nhid), jnp.float32) * 0.5
        b2 = jax.random.normal(k_b2, (ntoken,), jnp.float32) * 0.1
        token_ids = jax.random.randint(k_in, (batch, context), 0, ntoken, jnp.int32)

        params = prepare_params(emb, w1, b1, w2, b2, context, ninp)
        out = jax.block_until_ready(fnn_forward(token_ids, params, **tiles))
        ref = fnn_reference(token_ids, emb, w1, b1, w2, b2, context, ninp)

        assert out.shape == (batch, ntoken)
        assert bool(jnp.all(jnp.isfinite(out)))
        assert jnp.allclose(jnp.sum(jnp.exp(out), axis=1), 1.0, atol=1e-3)
        assert jnp.allclose(out, ref, atol=5e-2, rtol=3e-2), \
            f"case {case_idx}: max abs diff {float(jnp.max(jnp.abs(out - ref)))}"

    # Aligned config exercising a real (2, 2) grid.
    run_case(0, ntoken=256, ninp=32, nhid=64, context=4, batch=16,
             batch_tile=8, vocab_tile=128)
    # Unaligned config exercising batch / hidden / vocab padding paths.
    run_case(1, ntoken=250, ninp=24, nhid=100, context=3, batch=10)

    print("KERNEL_OK")
</pallas_src>

<mosaic_0001>
module attributes {stable_mosaic.version = 11 : i64} {
  func.func @fnn_kernel(%arg0: i32, %arg1: i32, %arg2: memref<64xi32, #tpu.memory_space<smem>>, %arg3: memref<256x32xf32, #tpu.memory_space<vmem>>, %arg4: memref<4x32xf32, #tpu.memory_space<vmem>>, %arg5: memref<128x128xbf16, #tpu.memory_space<vmem>>, %arg6: memref<1x128xf32, #tpu.memory_space<vmem>>, %arg7: memref<1x128xf32, #tpu.memory_space<vmem>>, %arg8: memref<128x128xbf16, #tpu.memory_space<vmem>>, %arg9: memref<1x128xf32, #tpu.memory_space<vmem>>, %arg10: memref<8x256xf32, #tpu.memory_space<vmem>>, %arg11: memref<32x32xf32, #tpu.memory_space<vmem>>, %arg12: memref<8x128xbf16, #tpu.memory_space<vmem>>, %arg13: memref<8x1xf32, #tpu.memory_space<vmem>>, %arg14: memref<8x1xf32, #tpu.memory_space<vmem>>) attributes {dimension_semantics = [#tpu.dimension_semantics<parallel>, #tpu.dimension_semantics<arbitrary>], iteration_bounds = array<i64: 2, 2>, scalar_prefetch = 1 : i64, scratch_operands = 4 : i64, tpu.core_type = #tpu.core_type<tc>, window_params = [{pipeline_mode = #tpu.pipeline_mode<synchronous>, transform_indices = @transform_0, window_bounds = array<i64: 256, 32>}, {pipeline_mode = #tpu.pipeline_mode<synchronous>, transform_indices = @transform_1, window_bounds = array<i64: 4, 32>}, {pipeline_mode = #tpu.pipeline_mode<synchronous>, transform_indices = @transform_2, window_bounds = array<i64: 128, 128>}, {pipeline_mode = #tpu.pipeline_mode<synchronous>, transform_indices = @transform_3, window_bounds = array<i64: 1, 128>}, {pipeline_mode = #tpu.pipeline_mode<synchronous>, transform_indices = @transform_4, window_bounds = array<i64: 1, 128>}, {transform_indices = @transform_5, window_bounds = array<i64: 128, 128>}, {transform_indices = @transform_6, window_bounds = array<i64: 1, 128>}, {transform_indices = @transform_7, window_bounds = array<i64: 8, 256>}]} {
    %c0_i32 = arith.constant 0 : i32
    %0 = arith.cmpi eq, %arg1, %c0_i32 : i32
    %1 = arith.extui %0 : i1 to i32
    %c0_i32_0 = arith.constant 0 : i32
    %2 = arith.cmpi ne, %1, %c0_i32_0 : i32
    scf.if %2 {
      %c8_i32 = arith.constant 8 : i32
      %32 = arith.muli %arg0, %c8_i32 : i32
      %c0_i32_18 = arith.constant 0 : i32
      %c8_i32_19 = arith.constant 8 : i32
      %33 = arith.addi %c0_i32_18, %c8_i32_19 : i32
      %c1_i32_20 = arith.constant 1 : i32
      scf.for %arg15 = %c0_i32_18 to %33 step %c1_i32_20  : i32 {
        %c1_i32_54 = arith.constant 1 : i32
        %80 = arith.muli %arg15, %c1_i32_54 : i32
        %c0_i32_55 = arith.constant 0 : i32
        %81 = arith.addi %c0_i32_55, %80 : i32
        %82 = arith.addi %32, %81 : i32
        %c4_i32 = arith.constant 4 : i32
        %83 = arith.muli %82, %c4_i32 : i32
        %c0_i32_56 = arith.constant 0 : i32
        %84 = arith.addi %83, %c0_i32_56 : i32
        %85 = arith.index_cast %84 : i32 to index
        %86 = memref.load %arg2[%85] : memref<64xi32, #tpu.memory_space<smem>>
        %87 = arith.index_cast %86 : i32 to index
        %c0_57 = arith.constant 0 : index
        %88 = vector.load %arg3[%87, %c0_57] : memref<256x32xf32, #tpu.memory_space<vmem>>, vector<1x32xf32>
        %c0_i32_58 = arith.constant 0 : i32
        %89 = arith.addi %c0_i32_58, %81 : i32
        %90 = arith.index_cast %89 : i32 to index
        %c0_59 = arith.constant 0 : index
        %91 = vector.load %arg11[%90, %c0_59] : memref<32x32xf32, #tpu.memory_space<vmem>>, vector<1x32xf32>
        tpu.vector_store %arg11[%90, %c0_59], %88 {strides = array<i32>} : memref<32x32xf32, #tpu.memory_space<vmem>>, vector<1x32xf32>,
        %c1_i32_60 = arith.constant 1 : i32
        %92 = arith.addi %83, %c1_i32_60 : i32
        %93 = arith.index_cast %92 : i32 to index
        %94 = memref.load %arg2[%93] : memref<64xi32, #tpu.memory_space<smem>>
        %95 = arith.index_cast %94 : i32 to index
        %c0_61 = arith.constant 0 : index
        %96 = vector.load %arg3[%95, %c0_61] : memref<256x32xf32, #tpu.memory_space<vmem>>, vector<1x32xf32>
        %c8_i32_62 = arith.constant 8 : i32
        %97 = arith.addi %c8_i32_62, %81 : i32
        %98 = arith.index_cast %97 : i32 to index
        %c0_63 = arith.constant 0 : index
        %99 = vector.load %arg11[%98, %c0_63] : memref<32x32xf32, #tpu.memory_space<vmem>>, vector<1x32xf32>
        tpu.vector_store %arg11[%98, %c0_63], %96 {strides = array<i32>} : memref<32x32xf32, #tpu.memory_space<vmem>>, vector<1x32xf32>,
        %c2_i32 = arith.constant 2 : i32
        %100 = arith.addi %83, %c2_i32 : i32
        %101 = arith.index_cast %100 : i32 to index
        %102 = memref.load %arg2[%101] : memref<64xi32, #tpu.memory_space<smem>>
        %103 = arith.index_cast %102 : i32 to index
        %c0_64 = arith.constant 0 : index
        %104 = vector.load %arg3[%103, %c0_64] : memref<256x32xf32, #tpu.memory_space<vmem>>, vector<1x32xf32>
        %c16_i32 = arith.constant 16 : i32
        %105 = arith.addi %c16_i32, %81 : i32
        %106 = arith.index_cast %105 : i32 to index
        %c0_65 = arith.constant 0 : index
        %107 = vector.load %arg11[%106, %c0_65] : memref<32x32xf32, #tpu.memory_space<vmem>>, vector<1x32xf32>
        tpu.vector_store %arg11[%106, %c0_65], %104 {strides = array<i32>} : memref<32x32xf32, #tpu.memory_space<vmem>>, vector<1x32xf32>,
        %c3_i32 = arith.constant 3 : i32
        %108 = arith.addi %83, %c3_i32 : i32
        %109 = arith.index_cast %108 : i32 to index
        %110 = memref.load %arg2[%109] : memref<64xi32, #tpu.memory_space<smem>>
        %111 = arith.index_cast %110 : i32 to index
        %c0_66 = arith.constant 0 : index
        %112 = vector.load %arg3[%111, %c0_66] : memref<256x32xf32, #tpu.memory_space<vmem>>, vector<1x32xf32>
        %c24_i32 = arith.constant 24 : i32
        %113 = arith.addi %c24_i32, %81 : i32
        %114 = arith.index_cast %113 : i32 to index
        %c0_67 = arith.constant 0 : index
        %115 = vector.load %arg11[%114, %c0_67] : memref<32x32xf32, #tpu.memory_space<vmem>>, vector<1x32xf32>
        tpu.vector_store %arg11[%114, %c0_67], %112 {strides = array<i32>} : memref<32x32xf32, #tpu.memory_space<vmem>>, vector<1x32xf32>,
      }
      %c8_i32_21 = arith.constant 8 : i32
      %cst_22 = arith.constant 0.000000e+00 : f32
      %34 = vector.broadcast %cst_22 : f32 to vector<8x128xf32>
      %c0_23 = arith.constant 0 : index
      %c0_24 = arith.constant 0 : index
      %35 = vector.load %arg11[%c0_23, %c0_24] : memref<32x32xf32, #tpu.memory_space<vmem>>, vector<8x32xf32>
      %c0_25 = arith.constant 0 : index
      %c0_26 = arith.constant 0 : index
      %36 = vector.load %arg4[%c0_25, %c0_26] : memref<4x32xf32, #tpu.memory_space<vmem>>, vector<1x32xf32>
      %37 = vector.broadcast %36 : vector<1x32xf32> to vector<8x32xf32>
      %38 = arith.mulf %35, %37 : vector<8x32xf32>
      %39 = arith.truncf %38 : vector<8x32xf32> to vector<8x32xbf16>
      %c0_27 = arith.constant 0 : index
      %c0_28 = arith.constant 0 : index
      %40 = vector.load %arg5[%c0_27, %c0_28] : memref<128x128xbf16, #tpu.memory_space<vmem>>, vector<32x128xbf16>
      %cst_29 = arith.constant dense<0.000000e+00> : vector<8x128xf32>
      %41 = tpu.matmul %39, %40, %cst_29 {dimension_numbers = #tpu.dot_dimension_numbers<[1], [0], [0], [1], [0, 0, 1, 1], [], []>} : vector<8x32xbf16>, vector<32x128xbf16>, vector<8x128xf32> -> vector<8x128xf32>
      %42 = arith.addf %34, %41 : vector<8x128xf32>
      %c8 = arith.constant 8 : index
      %c0_30 = arith.constant 0 : index
      %43 = vector.load %arg11[%c8, %c0_30] : memref<32x32xf32, #tpu.memory_space<vmem>>, vector<8x32xf32>
      %c1 = arith.constant 1 : index
      %c0_31 = arith.constant 0 : index
      %44 = vector.load %arg4[%c1, %c0_31] : memref<4x32xf32, #tpu.memory_space<vmem>>, vector<1x32xf32>
      %45 = vector.broadcast %44 : vector<1x32xf32> to vector<8x32xf32>
      %46 = arith.mulf %43, %45 : vector<8x32xf32>
      %47 = arith.truncf %46 : vector<8x32xf32> to vector<8x32xbf16>
      %c32 = arith.constant 32 : index
      %c0_32 = arith.constant 0 : index
      %48 = vector.load %arg5[%c32, %c0_32] : memref<128x128xbf16, #tpu.memory_space<vmem>>, vector<32x128xbf16>
      %cst_33 = arith.constant dense<0.000000e+00> : vector<8x128xf32>
      %49 = tpu.matmul %47, %48, %cst_33 {dimension_numbers = #tpu.dot_dimension_numbers<[1], [0], [0], [1], [0, 0, 1, 1], [], []>} : vector<8x32xbf16>, vector<32x128xbf16>, vector<8x128xf32> -> vector<8x128xf32>
      %50 = arith.addf %42, %49 : vector<8x128xf32>
      %c16 = arith.constant 16 : index
      %c0_34 = arith.constant 0 : index
      %51 = vector.load %arg11[%c16, %c0_34] : memref<32x32xf32, #tpu.memory_space<vmem>>, vector<8x32xf32>
      %c2 = arith.constant 2 : index
      %c0_35 = arith.constant 0 : index
      %52 = vector.load %arg4[%c2, %c0_35] : memref<4x32xf32, #tpu.memory_space<vmem>>, vector<1x32xf32>
      %53 = vector.broadcast %52 : vector<1x32xf32> to vector<8x32xf32>
      %54 = arith.mulf %51, %53 : vector<8x32xf32>
      %55 = arith.truncf %54 : vector<8x32xf32> to vector<8x32xbf16>
      %c64 = arith.constant 64 : index
      %c0_36 = arith.constant 0 : index
      %56 = vector.load %arg5[%c64, %c0_36] : memref<128x128xbf16, #tpu.memory_space<vmem>>, vector<32x128xbf16>
      %cst_37 = arith.constant dense<0.000000e+00> : vector<8x128xf32>
      %57 = tpu.matmul %55, %56, %cst_37 {dimension_numbers = #tpu.dot_dimension_numbers<[1], [0], [0], [1], [0, 0, 1, 1], [], []>} : vector<8x32xbf16>, vector<32x128xbf16>, vector<8x128xf32> -> vector<8x128xf32>
      %58 = arith.addf %50, %57 : vector<8x128xf32>
      %c24 = arith.constant 24 : index
      %c0_38 = arith.constant 0 : index
      %59 = vector.load %arg11[%c24, %c0_38] : memref<32x32xf32, #tpu.memory_space<vmem>>, vector<8x32xf32>
      %c3 = arith.constant 3 : index
      %c0_39 = arith.constant 0 : index
      %60 = vector.load %arg4[%c3, %c0_39] : memref<4x32xf32, #tpu.memory_space<vmem>>, vector<1x32xf32>
      %61 = vector.broadcast %60 : vector<1x32xf32> to vector<8x32xf32>
      %62 = arith.mulf %59, %61 : vector<8x32xf32>
      %63 = arith.truncf %62 : vector<8x32xf32> to vector<8x32xbf16>
      %c96 = arith.constant 96 : index
      %c0_40 = arith.constant 0 : index
      %64 = vector.load %arg5[%c96, %c0_40] : memref<128x128xbf16, #tpu.memory_space<vmem>>, vector<32x128xbf16>
      %cst_41 = arith.constant dense<0.000000e+00> : vector<8x128xf32>
      %65 = tpu.matmul %63, %64, %cst_41 {dimension_numbers = #tpu.dot_dimension_numbers<[1], [0], [0], [1], [0, 0, 1, 1], [], []>} : vector<8x32xbf16>, vector<32x128xbf16>, vector<8x128xf32> -> vector<8x128xf32>
      %66 = arith.addf %58, %65 : vector<8x128xf32>
      %c0_42 = arith.constant 0 : index
      %c0_43 = arith.constant 0 : index
      %67 = vector.load %arg6[%c0_42, %c0_43] : memref<1x128xf32, #tpu.memory_space<vmem>>, vector<1x128xf32>
      %68 = vector.broadcast %67 : vector<1x128xf32> to vector<8x128xf32>
      %69 = arith.addf %66, %68 : vector<8x128xf32>
      %70 = math.tanh %69 : vector<8x128xf32>
      %c0_44 = arith.constant 0 : index
      %c0_45 = arith.constant 0 : index
      %71 = vector.load %arg7[%c0_44, %c0_45] : memref<1x128xf32, #tpu.memory_space<vmem>>, vector<1x128xf32>
      %72 = vector.broadcast %71 : vector<1x128xf32> to vector<8x128xf32>
      %73 = arith.mulf %70, %72 : vector<8x128xf32>
      %74 = arith.truncf %73 : vector<8x128xf32> to vector<8x128xbf16>
      %c0_46 = arith.constant 0 : index
      %c0_47 = arith.constant 0 : index
      %75 = vector.load %arg12[%c0_46, %c0_47] : memref<8x128xbf16, #tpu.memory_space<vmem>>, vector<8x128xbf16>
      tpu.vector_store %arg12[%c0_46, %c0_47], %74 {strides = array<i32>} : memref<8x128xbf16, #tpu.memory_space<vmem>>, vector<8x128xbf16>,
      %cst_48 = arith.constant 0xFF800000 : f32
      %76 = vector.broadcast %cst_48 : f32 to vector<8x1xf32>
      %c0_49 = arith.constant 0 : index
      %c0_50 = arith.constant 0 : index
      %77 = vector.load %arg13[%c0_49, %c0_50] : memref<8x1xf32, #tpu.memory_space<vmem>>, vector<8x1xf32>
      tpu.vector_store %arg13[%c0_49, %c0_50], %76 {strides = array<i32>} : memref<8x1xf32, #tpu.memory_space<vmem>>, vector<8x1xf32>,
      %cst_51 = arith.constant 0.000000e+00 : f32
      %78 = vector.broadcast %cst_51 : f32 to vector<8x1xf32>
      %c0_52 = arith.constant 0 : index
      %c0_53 = arith.constant 0 : index
      %79 = vector.load %arg14[%c0_52, %c0_53] : memref<8x1xf32, #tpu.memory_space<vmem>>, vector<8x1xf32>
      tpu.vector_store %arg14[%c0_52, %c0_53], %78 {strides = array<i32>} : memref<8x1xf32, #tpu.memory_space<vmem>>, vector<8x1xf32>,
    } else {
    }
    %c0 = arith.constant 0 : index
    %c0_1 = arith.constant 0 : index
    %3 = vector.load %arg12[%c0, %c0_1] : memref<8x128xbf16, #tpu.memory_space<vmem>>, vector<8x128xbf16>
    %c0_2 = arith.constant 0 : index
    %c0_3 = arith.constant 0 : index
    %4 = vector.load %arg8[%c0_2, %c0_3] : memref<128x128xbf16, #tpu.memory_space<vmem>>, vector<128x128xbf16>
    %cst = arith.constant dense<0.000000e+00> : vector<8x128xf32>
    %5 = tpu.matmul %3, %4, %cst {dimension_numbers = #tpu.dot_dimension_numbers<[1], [0], [0], [1], [0, 0, 1, 1], [], []>} : vector<8x128xbf16>, vector<128x128xbf16>, vector<8x128xf32> -> vector<8x128xf32>
    %c0_4 = arith.constant 0 : index
    %c0_5 = arith.constant 0 : index
    %6 = vector.load %arg9[%c0_4, %c0_5] : memref<1x128xf32, #tpu.memory_space<vmem>>, vector<1x128xf32>
    %7 = vector.broadcast %6 : vector<1x128xf32> to vector<8x128xf32>
    %8 = arith.addf %5, %7 : vector<8x128xf32>
    %c0_6 = arith.constant 0 : index
    %c0_7 = arith.constant 0 : index
    %9 = vector.load %arg13[%c0_6, %c0_7] : memref<8x1xf32, #tpu.memory_space<vmem>>, vector<8x1xf32>
    %cst_8 = arith.constant dense<0xFF800000> : vector<8xf32>
    %10 = vector.multi_reduction <maximumf>, %8, %cst_8 [1] : vector<8x128xf32> to vector<8xf32>
    %11 = vector.shape_cast %10 : vector<8xf32> to vector<8x1xf32>
    %12 = arith.maximumf %9, %11 : vector<8x1xf32>
    %c0_9 = arith.constant 0 : index
    %c0_10 = arith.constant 0 : index
    %13 = vector.load %arg14[%c0_9, %c0_10] : memref<8x1xf32, #tpu.memory_space<vmem>>, vector<8x1xf32>
    %14 = arith.subf %9, %12 : vector<8x1xf32>
    %15 = math.exp %14 : vector<8x1xf32>
    %16 = arith.mulf %13, %15 : vector<8x1xf32>
    %17 = vector.broadcast %12 : vector<8x1xf32> to vector<8x128xf32>
    %18 = arith.subf %8, %17 : vector<8x128xf32>
    %19 = math.exp %18 : vector<8x128xf32>
    %cst_11 = arith.constant dense<0.000000e+00> : vector<8xf32>
    %20 = vector.multi_reduction <add>, %19, %cst_11 [1] : vector<8x128xf32> to vector<8xf32>
    %21 = vector.shape_cast %20 : vector<8xf32> to vector<8x1xf32>
    %22 = arith.addf %16, %21 : vector<8x1xf32>
    %c0_12 = arith.constant 0 : index
    %c0_13 = arith.constant 0 : index
    %23 = vector.load %arg14[%c0_12, %c0_13] : memref<8x1xf32, #tpu.memory_space<vmem>>, vector<8x1xf32>
    tpu.vector_store %arg14[%c0_12, %c0_13], %22 {strides = array<i32>} : memref<8x1xf32, #tpu.memory_space<vmem>>, vector<8x1xf32>,
    %c0_14 = arith.constant 0 : index
    %c0_15 = arith.constant 0 : index
    %24 = vector.load %arg13[%c0_14, %c0_15] : memref<8x1xf32, #tpu.memory_space<vmem>>, vector<8x1xf32>
    tpu.vector_store %arg13[%c0_14, %c0_15], %12 {strides = array<i32>} : memref<8x1xf32, #tpu.memory_space<vmem>>, vector<8x1xf32>,
    %c128_i32 = arith.constant 128 : i32
    %25 = arith.muli %arg1, %c128_i32 : i32
    %26 = tpu.assume_multiple %25, 128 : i32
    %c0_16 = arith.constant 0 : index
    %27 = arith.index_cast %26 : i32 to index
    %28 = vector.load %arg10[%c0_16, %27] : memref<8x256xf32, #tpu.memory_space<vmem>>, vector<8x128xf32>
    tpu.vector_store %arg10[%c0_16, %27], %8 {strides = array<i32>} : memref<8x256xf32, #tpu.memory_space<vmem>>, vector<8x128xf32>,
    %c1_i32 = arith.constant 1 : i32
    %29 = arith.cmpi eq, %arg1, %c1_i32 : i32
    %30 = arith.extui %29 : i1 to i32
    %c0_i32_17 = arith.constant 0 : i32
    %31 = arith.cmpi ne, %30, %c0_i32_17 : i32
    scf.if %31 {
      %c0_18 = arith.constant 0 : index
      %c0_19 = arith.constant 0 : index
      %32 = vector.load %arg13[%c0_18, %c0_19] : memref<8x1xf32, #tpu.memory_space<vmem>>, vector<8x1xf32>
      %c0_20 = arith.constant 0 : index
      %c0_21 = arith.constant 0 : index
      %33 = vector.load %arg14[%c0_20, %c0_21] : memref<8x1xf32, #tpu.memory_space<vmem>>, vector<8x1xf32>
      %34 = math.log %33 : vector<8x1xf32>
      %35 = arith.addf %32, %34 : vector<8x1xf32>
      %c0_22 = arith.constant 0 : index
      %c0_23 = arith.constant 0 : index
      %36 = vector.load %arg10[%c0_22, %c0_23] : memref<8x256xf32, #tpu.memory_space<vmem>>, vector<8x256xf32>
      %37 = vector.broadcast %35 : vector<8x1xf32> to vector<8x256xf32>
      %38 = arith.subf %36, %37 : vector<8x256xf32>
      %c0_24 = arith.constant 0 : index
      %c0_25 = arith.constant 0 : index
      %39 = vector.load %arg10[%c0_24, %c0_25] : memref<8x256xf32, #tpu.memory_space<vmem>>, vector<8x256xf32>
      tpu.vector_store %arg10[%c0_24, %c0_25], %38 {strides = array<i32>} : memref<8x256xf32, #tpu.memory_space<vmem>>, vector<8x256xf32>,
    } else {
    }
    return
  }
  func.func @transform_0(%arg0: i32, %arg1: i32, %arg2: memref<64xi32, #tpu.memory_space<smem>>) -> (i32, i32) {
    %c0_i32 = arith.constant 0 : i32
    %c0_i32_0 = arith.constant 0 : i32
    %c0_i32_1 = arith.constant 0 : i32
    return %c0_i32, %c0_i32_0 : i32, i32
  }
  func.func @transform_1(%arg0: i32, %arg1: i32, %arg2: memref<64xi32, #tpu.memory_space<smem>>) -> (i32, i32) {
    %c0_i32 = arith.constant 0 : i32
    %c0_i32_0 = arith.constant 0 : i32
    %c0_i32_1 = arith.constant 0 : i32
    return %c0_i32, %c0_i32_0 : i32, i32
  }
  func.func @transform_2(%arg0: i32, %arg1: i32, %arg2: memref<64xi32, #tpu.memory_space<smem>>) -> (i32, i32) {
    %c0_i32 = arith.constant 0 : i32
    %c0_i32_0 = arith.constant 0 : i32
    %c0_i32_1 = arith.constant 0 : i32
    return %c0_i32, %c0_i32_0 : i32, i32
  }
  func.func @transform_3(%arg0: i32, %arg1: i32, %arg2: memref<64xi32, #tpu.memory_space<smem>>) -> (i32, i32) {
    %c0_i32 = arith.constant 0 : i32
    %c0_i32_0 = arith.constant 0 : i32
    %c0_i32_1 = arith.constant 0 : i32
    return %c0_i32, %c0_i32_0 : i32, i32
  }
  func.func @transform_4(%arg0: i32, %arg1: i32, %arg2: memref<64xi32, #tpu.memory_space<smem>>) -> (i32, i32) {
    %c0_i32 = arith.constant 0 : i32
    %c0_i32_0 = arith.constant 0 : i32
    %c0_i32_1 = arith.constant 0 : i32
    return %c0_i32, %c0_i32_0 : i32, i32
  }
  func.func @transform_5(%arg0: i32, %arg1: i32, %arg2: memref<64xi32, #tpu.memory_space<smem>>) -> (i32, i32) {
    %c0_i32 = arith.constant 0 : i32
    %c0_i32_0 = arith.constant 0 : i32
    return %c0_i32, %arg1 : i32, i32
  }
  func.func @transform_6(%arg0: i32, %arg1: i32, %arg2: memref<64xi32, #tpu.memory_space<smem>>) -> (i32, i32) {
    %c0_i32 = arith.constant 0 : i32
    %c0_i32_0 = arith.constant 0 : i32
    return %c0_i32, %arg1 : i32, i32
  }
  func.func @transform_7(%arg0: i32, %arg1: i32, %arg2: memref<64xi32, #tpu.memory_space<smem>>) -> (i32, i32) {
    %c0_i32 = arith.constant 0 : i32
    %c0_i32_0 = arith.constant 0 : i32
    return %arg0, %c0_i32 : i32, i32
  }
}

</mosaic_0001>

<llo_original>
// kernel: tpu_custom_call.1
$region0: #{tpu_custom_call.1}
  #allocation0 [shape = 'u32[]', space=smem, size = 0x4, offset = 0x4, fixed_abs, tag = 'smem constant byte address 0x4 - core index']
  #allocation1 [shape = 'u32[144,128]{1,0:T(1,128)}', space=vmem, size = 0x12000, scoped, tag = 'internal scratch']
  #allocation2 [shape = 'f32[32,32]{1,0:T(8,128)}', space=vmem, size = 0x4000, scoped, tag = 'scratch operand']
  #allocation3 [shape = 'bf16[8,128]{1,0:T(8,128)(2,1)}', space=vmem, size = 0x800, scoped, tag = 'scratch operand']
  #allocation4 [shape = 'f32[8,1]{1,0:T(8,128)}', space=vmem, size = 0x1000, scoped, tag = 'scratch operand']
  #allocation5 [shape = 'f32[8,1]{1,0:T(8,128)}', space=vmem, size = 0x1000, scoped, tag = 'scratch operand']
  #allocation6 [shape = 's32[1]{0}', space=sflag, size = 0x4, scoped, tag = 'scoped memory for tpu_custom_call.1']
  #allocation7 [shape = 'u8[512]{0}', space=smem, size = 0x200, scoped, tag = 'prefetched SMEM operand 0']
  %s0 = inlined_call_operand.vmem [shape: s32[64], index: 0, kind: input, shape index: {}]
  %s1 = inlined_call_operand.vmem [shape: f32[256,32], index: 1, kind: input, shape index: {}]
  %s2 = inlined_call_operand.vmem [shape: f32[4,32], index: 2, kind: input, shape index: {}]
  %s3 = inlined_call_operand.vmem [shape: bf16[128,128], index: 3, kind: input, shape index: {}]
  %s4 = inlined_call_operand.vmem [shape: f32[1,128], index: 4, kind: input, shape index: {}]
  %s5 = inlined_call_operand.vmem [shape: f32[1,128], index: 5, kind: input, shape index: {}]
  %s6 = inlined_call_operand.vmem [shape: bf16[128,256], index: 6, kind: input, shape index: {}]
  %s7 = inlined_call_operand.vmem [shape: f32[1,256], index: 7, kind: input, shape index: {}]
  %s8 = inlined_call_operand.hbm [shape: f32[16,256], index: 8, kind: output, shape index: {}]
  %s9 = sld [smem:[#allocation0]]
  $region117: #{tpu_custom_call.1} parent=0
    _
  %s11 = ssub.s32 1, %s9
  %s12 = scalar_select 0, %s11, %s9
  %s13 = sshll.u32 %s0, 4
  %s14 = int_to_ptr.vmem [resolvable:$true] %s13
  %16 = dma.vmem_to_smem %s14, 16, [#allocation7], [#allocation6]
  %17 = dma.done [#allocation6], 16
  %18 = sfence
  $region1: #{tpu_custom_call.1} parent=0
    #allocation8 [shape = 'u8[65536]{0}', space=vmem, size = 0x10000, scoped, tag = 'input window, operand 6']
    #allocation9 [shape = 'u8[16384]{0}', space=vmem, size = 0x4000, scoped, tag = 'output window, operand 0']
    #allocation10 [shape = 's32[2]{0}', space=sflag, size = 0x8, scoped, tag = 'scoped memory for tpu_custom_call.1']
    %19 = vsyncpa [#allocation10], 0
    %s20 = scalar_lea.sflag [#allocation10], 1
    %21 = vsyncpa %s20, 0
    loop: start=0, step=1, limit=6
    $region2: #{tpu_custom_call.1} parent=1 // loop_pre_header
      _
    $region3: #{tpu_custom_call.1} parent=1 // loop_header
      %s23 = sphi 0, %s27
      %p24 = scmp.ge.s32.totalorder %s23, 6
      %s30 = sphi 0, %s42
      %s31 = sphi 0, %s38
      %s32 = sphi 0, %s30
      %s33 = sphi 0, %s31
      %s34 = sphi 0, %s32
      %s35 = sphi 0, %s33
      %s43 = sphi 0, %s43
      %s45 = sphi 0, %s43
      %s46 = sphi 0, %s45
      %s60 = sphi 0, %s46
      %s64 = sphi 0, %s64
      %s66 = sphi 0, %s64
      %s67 = sphi 0, %s66
      %s81 = sphi 0, %s67
      %s85 = sphi 0, %s85
      %s87 = sphi 0, %s85
      %s88 = sphi 0, %s87
      %s102 = sphi 0, %s88
      %s106 = sphi 0, %s106
      %s108 = sphi 0, %s106
      %s109 = sphi 0, %s108
      %s123 = sphi 0, %s109
      %s127 = sphi 0, %s127
      %s129 = sphi 0, %s127
      %s130 = sphi 0, %s129
      %s144 = sphi 0, %s130
      %s150 = sphi 0, %s152
      %s153 = sphi 0, %s150
      %s154 = sphi 0, %s153
      %s170 = sphi 0, %s154
      %s176 = sphi 0, %s178
      %s179 = sphi 0, %s176
      %s180 = sphi 0, %s179
      %s196 = sphi 0, %s180
      %s202 = sphi 0, %s204
      %s205 = sphi 0, %s202
      %s206 = sphi 0, %s205
      %s222 = sphi 0, %s206
    $region4: #{tpu_custom_call.1} parent=1 // loop_header_branch
      %26 = sbr.rel (%p24) target = $region8
    $region5: #{tpu_custom_call.1} parent=1 // loop_body
      %s28 = ssub.s32 %s23, 1
      %s29 = ssub.s32 %s23, 2
      %s36 = sadd.s32 1, %s31
      %p37 = scmp.ge.s32.totalorder %s36, 2
      %s38 = scalar_select %p37, 0, %s36
      %s39 = sadd.s32 1, %s30
      %s40 = scalar_select %p37, %s39, %s30
      %p41 = scmp.ge.s32.totalorder %s40, 2
      %s42 = scalar_select %p41, 0, %s40
      %s44 = sadd.s32 %s43, 1
      %p47 = scmp.eq.s32.totalorder %s23, 3
      %p48 = scmp.ne.s32.totalorder %s43, %s45
      %p49 = scmp.eq.s32.totalorder %s23, 0
      %p50 = por %p48, %p49
      %p51 = scmp.ne.s32.totalorder %s43, %s45
      %p52 = scmp.eq.s32.totalorder %s28, 3
      %p53 = por %p51, %p52
      %p54 = scmp.ne.s32.totalorder %s45, %s46
      %p55 = scmp.eq.s32.totalorder %s28, 0
      %p56 = por %p54, %p55
      %p57 = scmp.ne.s32.totalorder %s45, %s46
      %p58 = scmp.eq.s32.totalorder %s29, 3
      %p59 = por %p57, %p58
      %p61 = scmp.ne.s32.totalorder %s46, %s60
      %p62 = scmp.eq.s32.totalorder %s29, 0
      %p63 = por %p61, %p62
      %s65 = sadd.s32 %s64, 1
      %p68 = scmp.eq.s32.totalorder %s23, 3
      %p69 = scmp.ne.s32.totalorder %s64, %s66
      %p70 = scmp.eq.s32.totalorder %s23, 0
      %p71 = por %p69, %p70
      %p72 = scmp.ne.s32.totalorder %s64, %s66
      %p73 = scmp.eq.s32.totalorder %s28, 3
      %p74 = por %p72, %p73
      %p75 = scmp.ne.s32.totalorder %s66, %s67
      %p76 = scmp.eq.s32.totalorder %s28, 0
      %p77 = por %p75, %p76
      %p78 = scmp.ne.s32.totalorder %s66, %s67
      %p79 = scmp.eq.s32.totalorder %s29, 3
      %p80 = por %p78, %p79
      %p82 = scmp.ne.s32.totalorder %s67, %s81
      %p83 = scmp.eq.s32.totalorder %s29, 0
      %p84 = por %p82, %p83
      %s86 = sadd.s32 %s85, 1
      %p89 = scmp.eq.s32.totalorder %s23, 3
      %p90 = scmp.ne.s32.totalorder %s85, %s87
      %p91 = scmp.eq.s32.totalorder %s23, 0
      %p92 = por %p90, %p91
      %p93 = scmp.ne.s32.totalorder %s85, %s87
      %p94 = scmp.eq.s32.totalorder %s28, 3
      %p95 = por %p93, %p94
      %p96 = scmp.ne.s32.totalorder %s87, %s88
      %p97 = scmp.eq.s32.totalorder %s28, 0
      %p98 = por %p96, %p97
      %p99 = scmp.ne.s32.totalorder %s87, %s88
      %p100 = scmp.eq.s32.totalorder %s29, 3
      %p101 = por %p99, %p100
      %p103 = scmp.ne.s32.totalorder %s88, %s102
      %p104 = scmp.eq.s32.totalorder %s29, 0
      %p105 = por %p103, %p104
      %s107 = sadd.s32 %s106, 1
      %p110 = scmp.eq.s32.totalorder %s23, 3
      %p111 = scmp.ne.s32.totalorder %s106, %s108
      %p112 = scmp.eq.s32.totalorder %s23, 0
      %p113 = por %p111, %p112
      %p114 = scmp.ne.s32.totalorder %s106, %s108
      %p115 = scmp.eq.s32.totalorder %s28, 3
      %p116 = por %p114, %p115
      %p117 = scmp.ne.s32.totalorder %s108, %s109
      %p118 = scmp.eq.s32.totalorder %s28, 0
      %p119 = por %p117, %p118
      %p120 = scmp.ne.s32.totalorder %s108, %s109
      %p121 = scmp.eq.s32.totalorder %s29, 3
      %p122 = por %p120, %p121
      %p124 = scmp.ne.s32.totalorder %s109, %s123
      %p125 = scmp.eq.s32.totalorder %s29, 0
      %p126 = por %p124, %p125
      %s128 = sadd.s32 %s127, 1
      %p131 = scmp.eq.s32.totalorder %s23, 3
      %p132 = scmp.ne.s32.totalorder %s127, %s129
      %p133 = scmp.eq.s32.totalorder %s23, 0
      %p134 = por %p132, %p133
      %p135 = scmp.ne.s32.totalorder %s127, %s129
      %p136 = scmp.eq.s32.totalorder %s28, 3
      %p137 = por %p135, %p136
      %p138 = scmp.ne.s32.totalorder %s129, %s130
      %p139 = scmp.eq.s32.totalorder %s28, 0
      %p140 = por %p138, %p139
      %p141 = scmp.ne.s32.totalorder %s129, %s130
      %p142 = scmp.eq.s32.totalorder %s29, 3
      %p143 = por %p141, %p142
      %p145 = scmp.ne.s32.totalorder %s130, %s144
      %p146 = scmp.eq.s32.totalorder %s29, 0
      %p147 = por %p145, %p146
      %s148 = ssub.s32 %s31, %s38
      %p149 = scmp.eq.s32.totalorder %s148, 0
      %s151 = sadd.s32 %s150, 1
      %s152 = scalar_select %p149, %s150, %s151
      %p155 = pneg %p149
      %p156 = scmp.eq.s32.totalorder %s23, 3
      %p157 = por %p155, %p156
      %p158 = scmp.ne.s32.totalorder %s150, %s153
      %p159 = scmp.eq.s32.totalorder %s23, 0
      %p160 = por %p158, %p159
      %p161 = scmp.ne.s32.totalorder %s150, %s153
      %p162 = scmp.eq.s32.totalorder %s28, 3
      %p163 = por %p161, %p162
      %p164 = scmp.ne.s32.totalorder %s153, %s154
      %p165 = scmp.eq.s32.totalorder %s28, 0
      %p166 = por %p164, %p165
      %p167 = scmp.ne.s32.totalorder %s153, %s154
      %p168 = scmp.eq.s32.totalorder %s29, 3
      %p169 = por %p167, %p168
      %p171 = scmp.ne.s32.totalorder %s154, %s170
      %p172 = scmp.eq.s32.totalorder %s29, 0
      %p173 = por %p171, %p172
      %s174 = ssub.s32 %s31, %s38
      %p175 = scmp.eq.s32.totalorder %s174, 0
      %s177 = sadd.s32 %s176, 1
      %s178 = scalar_select %p175, %s176, %s177
      %p181 = pneg %p175
      %p182 = scmp.eq.s32.totalorder %s23, 3
      %p183 = por %p181, %p182
      %p184 = scmp.ne.s32.totalorder %s176, %s179
      %p185 = scmp.eq.s32.totalorder %s23, 0
      %p186 = por %p184, %p185
      %p187 = scmp.ne.s32.totalorder %s176, %s179
      %p188 = scmp.eq.s32.totalorder %s28, 3
      %p189 = por %p187, %p188
      %p190 = scmp.ne.s32.totalorder %s179, %s180
      %p191 = scmp.eq.s32.totalorder %s28, 0
      %p192 = por %p190, %p191
      %p193 = scmp.ne.s32.totalorder %s179, %s180
      %p194 = scmp.eq.s32.totalorder %s29, 3
      %p195 = por %p193, %p194
      %p197 = scmp.ne.s32.totalorder %s180, %s196
      %p198 = scmp.eq.s32.totalorder %s29, 0
      %p199 = por %p197, %p198
      %s200 = ssub.s32 %s30, %s42
      %p201 = scmp.eq.s32.totalorder %s200, 0
      %s203 = sadd.s32 %s202, 1
      %s204 = scalar_select %p201, %s202, %s203
      %p207 = pneg %p201
      %p208 = scmp.eq.s32.totalorder %s23, 3
      %p209 = por %p207, %p208
      %p210 = scmp.ne.s32.totalorder %s202, %s205
      %p211 = scmp.eq.s32.totalorder %s23, 0
      %p212 = por %p210, %p211
      %p213 = scmp.ne.s32.totalorder %s202, %s205
      %p214 = scmp.eq.s32.totalorder %s28, 3
      %p215 = por %p213, %p214
      %p216 = scmp.ne.s32.totalorder %s205, %s206
      %p217 = scmp.eq.s32.totalorder %s28, 0
      %p218 = por %p216, %p217
      %p219 = scmp.ne.s32.totalorder %s205, %s206
      %p220 = scmp.eq.s32.totalorder %s29, 3
      %p221 = por %p219, %p220
      %p223 = scmp.ne.s32.totalorder %s206, %s222
      %p224 = scmp.eq.s32.totalorder %s29, 0
      %p225 = por %p223, %p224
      %p226 = scmp.le.s32.totalorder 1, %s23
      %p227 = scmp.lt.s32.totalorder %s23, 5
      %p228 = pnand %p226, %p227
      %p229 = pneg %p228
      // Predicated region
      $region9: #{tpu_custom_call.1} parent=5 // pred_check
        _
      $region10: #{tpu_custom_call.1} parent=5 // pred_check_branch
        %231 = sbr.rel (%p228) target = $region12
      $region11: #{tpu_custom_call.1} parent=5 // pred_region
        %s232 = ssub.s32 %s23, 1
        // Predicated region
        $region13: #{tpu_custom_call.1} parent=11 // pred_check
          %p233 = pneg %p56
        $region14: #{tpu_custom_call.1} parent=11 // pred_check_branch
          %235 = sbr.rel (%p233) target = $region16
        $region15: #{tpu_custom_call.1} parent=11 // pred_region
          _
        $region16: #{tpu_custom_call.1} parent=11 // pred_fallthru
          _
        // Predicated region
        $region17: #{tpu_custom_call.1} parent=11 // pred_check
          %p236 = pneg %p77
        $region18: #{tpu_custom_call.1} parent=11 // pred_check_branch
          %238 = sbr.rel (%p236) target = $region20
        $region19: #{tpu_custom_call.1} parent=11 // pred_region
          _
        $region20: #{tpu_custom_call.1} parent=11 // pred_fallthru
          _
        // Predicated region
        $region21: #{tpu_custom_call.1} parent=11 // pred_check
          %p239 = pneg %p98
        $region22: #{tpu_custom_call.1} parent=11 // pred_check_branch
          %241 = sbr.rel (%p239) target = $region24
        $region23: #{tpu_custom_call.1} parent=11 // pred_region
          _
        $region24: #{tpu_custom_call.1} parent=11 // pred_fallthru
          _
        // Predicated region
        $region25: #{tpu_custom_call.1} parent=11 // pred_check
          %p242 = pneg %p119
        $region26: #{tpu_custom_call.1} parent=11 // pred_check_branch
          %244 = sbr.rel (%p242) target = $region28
        $region27: #{tpu_custom_call.1} parent=11 // pred_region
          _
        $region28: #{tpu_custom_call.1} parent=11 // pred_fallthru
          _
        // Predicated region
        $region29: #{tpu_custom_call.1} parent=11 // pred_check
          %p245 = pneg %p140
        $region30: #{tpu_custom_call.1} parent=11 // pred_check_branch
          %247 = sbr.rel (%p245) target = $region32
        $region31: #{tpu_custom_call.1} parent=11 // pred_region
          _
        $region32: #{tpu_custom_call.1} parent=11 // pred_fallthru
          _
      $region12: #{tpu_custom_call.1} parent=5 // pred_fallthru
        _
      %p248 = scmp.lt.s32.totalorder %s23, 4
      // Predicated region
      $region33: #{tpu_custom_call.1} parent=5 // pred_check
        %p249 = pneg %p248
      $region34: #{tpu_custom_call.1} parent=5 // pred_check_branch
        %251 = sbr.rel (%p249) target = $region36
      $region35: #{tpu_custom_call.1} parent=5 // pred_region
        // Predicated region
        $region37: #{tpu_custom_call.1} parent=35 // pred_check
          %p252 = pneg %p160
        $region38: #{tpu_custom_call.1} parent=35 // pred_check_branch
          %254 = sbr.rel (%p252) target = $region40
        $region39: #{tpu_custom_call.1} parent=35 // pred_region
          %s255 = sand.u32 %s150, 1
          %s256 = sand.u32 %s150, 1
          %s257 = smul.addr %s256, 64
          %s258 = scalar_lea.vmem [#allocation8], %s257
          %s259 = smul.addr %s31, 4
          %s260 = scalar_lea.vmem %s6, %s259
          // Predicated region
          $region41: #{tpu_custom_call.1} parent=39 // pred_check
            _
          $region42: #{tpu_custom_call.1} parent=39 // pred_check_branch
            %262 = sbr.rel (0) target = $region44
          $region43: #{tpu_custom_call.1} parent=39 // pred_region
            // Predicated region
            $region45: #{tpu_custom_call.1} parent=43 // pred_check
              _
            $region46: #{tpu_custom_call.1} parent=43 // pred_check_branch
              %264 = sbr.rel target = $region48
            $region47: #{tpu_custom_call.1} parent=43 // pred_region
              // Predicated region
              $region60: #{tpu_custom_call.1} parent=47 // pred_check
                _
              $region61: #{tpu_custom_call.1} parent=47 // pred_check_branch
                %309 = sbr.rel (0) target = $region63
              $region62: #{tpu_custom_call.1} parent=47 // pred_region
                loop: start=0, step=1, limit=1
                $region64: #{tpu_custom_call.1} parent=62 // loop_pre_header
                  _
                $region65: #{tpu_custom_call.1} parent=62 // loop_header
                  %s311 = sphi 0, %s315
                  %p312 = scmp.ge.s32.totalorder %s311, 1
                  %s316 = sphi %s260, %s260
                  %s317 = sphi %s258, %s258
                $region66: #{tpu_custom_call.1} parent=62 // loop_header_branch
                  %314 = sbr.rel (%p312) target = $region70
                $region67: #{tpu_custom_call.1} parent=62 // loop_body
                  _
                $region68: #{tpu_custom_call.1} parent=62 // loop_footer
                  %s315 = sadd.s32 1, %s311
                $region69: #{tpu_custom_call.1} parent=62 // loop_footer_branch
                  %310 = sbr.rel target = $region65
                $region70: #{tpu_custom_call.1} parent=62 // loop_exit
                  _
                loop: start=0, step=1, limit=1
                $region71: #{tpu_custom_call.1} parent=62 // loop_pre_header
                  _
                $region72: #{tpu_custom_call.1} parent=62 // loop_header
                  %s320 = sphi 0, %s324
                  %p321 = scmp.ge.s32.totalorder %s320, 1
                  %s325 = sphi %s260, %s260
                  %s326 = sphi %s258, %s258
                $region73: #{tpu_custom_call.1} parent=62 // loop_header_branch
                  %323 = sbr.rel (%p321) target = $region77
                $region74: #{tpu_custom_call.1} parent=62 // loop_body
                  %v327 = vld [vmem:[%s325] sm:$0xf]
                  %328 = vst [vmem:[%s326] sm:$0xf] %v327
                  %v329 = vld [vmem:[%s325 + $0x8] sm:$0xf]
                  %330 = vst [vmem:[%s326 + $0x4] sm:$0xf] %v329
                  %v331 = vld [vmem:[%s325 + $0x10] sm:$0xf]
                  %332 = vst [vmem:[%s326 + $0x8] sm:$0xf] %v331
                  %v333 = vld [vmem:[%s325 + $0x18] sm:$0xf]
                  %334 = vst [vmem:[%s326 + $0xc] sm:$0xf] %v333
                  %v335 = vld [vmem:[%s325 + $0x20] sm:$0xf]
                  %336 = vst [vmem:[%s326 + $0x10] sm:$0xf] %v335
                  %v337 = vld [vmem:[%s325 + $0x28] sm:$0xf]
                  %338 = vst [vmem:[%s326 + $0x14] sm:$0xf] %v337
                  %v339 = vld [vmem:[%s325 + $0x30] sm:$0xf]
                  %340 = vst [vmem:[%s326 + $0x18] sm:$0xf] %v339
                  %v341 = vld [vmem:[%s325 + $0x38] sm:$0xf]
                  %342 = vst [vmem:[%s326 + $0x1c] sm:$0xf] %v341
                  %v343 = vld [vmem:[%s325 + $0x40] sm:$0xf]
                  %344 = vst [vmem:[%s326 + $0x20] sm:$0xf] %v343
                  %v345 = vld [vmem:[%s325 + $0x48] sm:$0xf]
                  %346 = vst [vmem:[%s326 + $0x24] sm:$0xf] %v345
                  %v347 = vld [vmem:[%s325 + $0x50] sm:$0xf]
                  %348 = vst [vmem:[%s326 + $0x28] sm:$0xf] %v347
                  %v349 = vld [vmem:[%s325 + $0x58] sm:$0xf]
                  %350 = vst [vmem:[%s326 + $0x2c] sm:$0xf] %v349
                  %v351 = vld [vmem:[%s325 + $0x60] sm:$0xf]
                  %352 = vst [vmem:[%s326 + $0x30] sm:$0xf] %v351
                  %v353 = vld [vmem:[%s325 + $0x68] sm:$0xf]
                  %354 = vst [vmem:[%s326 + $0x34] sm:$0xf] %v353
                  %v355 = vld [vmem:[%s325 + $0x70] sm:$0xf]
                  %356 = vst [vmem:[%s326 + $0x38] sm:$0xf] %v355
                  %v357 = vld [vmem:[%s325 + $0x78] sm:$0xf]
                  %358 = vst [vmem:[%s326 + $0x3c] sm:$0xf] %v357
                $region75: #{tpu_custom_call.1} parent=62 // loop_footer
                  %s324 = sadd.s32 1, %s320
                $region76: #{tpu_custom_call.1} parent=62 // loop_footer_branch
                  %319 = sbr.rel target = $region72
                $region77: #{tpu_custom_call.1} parent=62 // loop_exit
                  _
              $region63: #{tpu_custom_call.1} parent=47 // pred_fallthru
                _
            $region48: #{tpu_custom_call.1} parent=43 // pred_fallthru
              _
            // Predicated region
            $region49: #{tpu_custom_call.1} parent=43 // pred_check
              _
            $region50: #{tpu_custom_call.1} parent=43 // pred_check_branch
              %266 = sbr.rel (0) target = $region52
            $region51: #{tpu_custom_call.1} parent=43 // pred_region
              loop: start=0, step=1, limit=1
              $region53: #{tpu_custom_call.1} parent=51 // loop_pre_header
                _
              $region54: #{tpu_custom_call.1} parent=51 // loop_header
                %s269 = sphi 0, %s273
                %p270 = scmp.ge.s32.totalorder %s269, 1
                %s274 = sphi %s260, %s260
                %s275 = sphi %s258, %s258
              $region55: #{tpu_custom_call.1} parent=51 // loop_header_branch
                %272 = sbr.rel (%p270) target = $region59
              $region56: #{tpu_custom_call.1} parent=51 // loop_body
                %v276 = vld [vmem:[%s274] sm:$0xf]
                %277 = vst [vmem:[%s275] sm:$0xf] %v276
                %v278 = vld [vmem:[%s274 + $0x8] sm:$0xf]
                %279 = vst [vmem:[%s275 + $0x4] sm:$0xf] %v278
                %v280 = vld [vmem:[%s274 + $0x10] sm:$0xf]
                %281 = vst [vmem:[%s275 + $0x8] sm:$0xf] %v280
                %v282 = vld [vmem:[%s274 + $0x18] sm:$0xf]
                %283 = vst [vmem:[%s275 + $0xc] sm:$0xf] %v282
                %v284 = vld [vmem:[%s274 + $0x20] sm:$0xf]
                %285 = vst [vmem:[%s275 + $0x10] sm:$0xf] %v284
                %v286 = vld [vmem:[%s274 + $0x28] sm:$0xf]
                %287 = vst [vmem:[%s275 + $0x14] sm:$0xf] %v286
                %v288 = vld [vmem:[%s274 + $0x30] sm:$0xf]
                %289 = vst [vmem:[%s275 + $0x18] sm:$0xf] %v288
                %v290 = vld [vmem:[%s274 + $0x38] sm:$0xf]
                %291 = vst [vmem:[%s275 + $0x1c] sm:$0xf] %v290
                %v292 = vld [vmem:[%s274 + $0x40] sm:$0xf]
                %293 = vst [vmem:[%s275 + $0x20] sm:$0xf] %v292
                %v294 = vld [vmem:[%s274 + $0x48] sm:$0xf]
                %295 = vst [vmem:[%s275 + $0x24] sm:$0xf] %v294
                %v296 = vld [vmem:[%s274 + $0x50] sm:$0xf]
                %297 = vst [vmem:[%s275 + $0x28] sm:$0xf] %v296
                %v298 = vld [vmem:[%s274 + $0x58] sm:$0xf]
                %299 = vst [vmem:[%s275 + $0x2c] sm:$0xf] %v298
                %v300 = vld [vmem:[%s274 + $0x60] sm:$0xf]
                %301 = vst [vmem:[%s275 + $0x30] sm:$0xf] %v300
                %v302 = vld [vmem:[%s274 + $0x68] sm:$0xf]
                %303 = vst [vmem:[%s275 + $0x34] sm:$0xf] %v302
                %v304 = vld [vmem:[%s274 + $0x70] sm:$0xf]
                %305 = vst [vmem:[%s275 + $0x38] sm:$0xf] %v304
                %v306 = vld [vmem:[%s274 + $0x78] sm:$0xf]
                %307 = vst [vmem:[%s275 + $0x3c] sm:$0xf] %v306
              $region57: #{tpu_custom_call.1} parent=51 // loop_footer
                %s273 = sadd.s32 1, %s269
              $region58: #{tpu_custom_call.1} parent=51 // loop_footer_branch
                %268 = sbr.rel target = $region54
              $region59: #{tpu_custom_call.1} parent=51 // loop_exit
                _
            $region52: #{tpu_custom_call.1} parent=43 // pred_fallthru
              _
          $region44: #{tpu_custom_call.1} parent=39 // pred_fallthru
            _
          %359 = vnop
        $region40: #{tpu_custom_call.1} parent=35 // pred_fallthru
          _
        // Predicated region
        $region78: #{tpu_custom_call.1} parent=35 // pred_check
          %p360 = pneg %p186
        $region79: #{tpu_custom_call.1} parent=35 // pred_check_branch
          %362 = sbr.rel (%p360) target = $region81
        $region80: #{tpu_custom_call.1} parent=35 // pred_region
          %p363 = scmp.lt.s32.totalorder %s31, 1
          %s364 = scalar_select %p363, %s31, 1
          %s365 = scalar_lea.vmem %s7, %s364
        $region81: #{tpu_custom_call.1} parent=35 // pred_fallthru
          _
      $region36: #{tpu_custom_call.1} parent=5 // pred_fallthru
        _
      %p366 = scmp.le.s32.totalorder 1, %s23
      %p367 = scmp.lt.s32.totalorder %s23, 5
      %p368 = pnand %p366, %p367
      %p369 = pneg %p368
      // Predicated region
      $region82: #{tpu_custom_call.1} parent=5 // pred_check
        _
      $region83: #{tpu_custom_call.1} parent=5 // pred_check_branch
        %371 = sbr.rel (%p368) target = $region85
      $region84: #{tpu_custom_call.1} parent=5 // pred_region
        %s372 = ssub.s32 %s23, 1
        %s373 = sand.u32 %s153, 1
        %s374 = sand.u32 %s153, 1
        %s375 = smul.addr %s374, 64
        %s376 = scalar_lea.vmem [#allocation8], %s375
        // Predicated region
        $region86: #{tpu_custom_call.1} parent=84 // pred_check
          %p377 = pneg %p166
        $region87: #{tpu_custom_call.1} parent=84 // pred_check_branch
          %379 = sbr.rel (%p377) target = $region89
        $region88: #{tpu_custom_call.1} parent=84 // pred_region
          _
        $region89: #{tpu_custom_call.1} parent=84 // pred_fallthru
          _
        %p380 = pneg %p56
        %p381 = pneg %p53
        %p382 = pneg %p77
        %p383 = pneg %p74
        %p384 = pneg %p98
        %p385 = pneg %p95
        %p386 = pneg %p119
        %p387 = pneg %p116
        %p388 = pneg %p140
        %p389 = pneg %p137
        %s390 = sand.u32 %s153, 1
        %s391 = sand.u32 %s153, 1
        %s392 = smul.addr %s391, 64
        %s393 = scalar_lea.vmem [#allocation8], %s392
        %p394 = pneg %p166
        %p395 = pneg %p163
        %p396 = scmp.lt.s32.totalorder %s33, 1
        %s397 = scalar_select %p396, %s33, 1
        %s398 = scalar_lea.vmem %s7, %s397
        %p399 = pneg %p192
        %p400 = pneg %p189
        %p401 = pneg %p218
        %p402 = pneg %p215
        %s403 = sand.u32 %s205, 1
        %s404 = scalar_lea.sflag [#allocation10], %s403
        %s405 = sand.u32 %s205, 1
        %s406 = smul.addr %s405, 16
        %s407 = scalar_lea.vmem [#allocation9], %s406
        %p408 = scmp.lt.s32.totalorder %s33, 1
        %s409 = scalar_select %p408, %s33, 1
        %s410 = scalar_lea.vmem %s7, %s409
        %p412 = scmp.eq.s32.totalorder %s33, 0
        // Predicated region
        $region90: #{tpu_custom_call.1} parent=84 // pred_check
          %p413 = pneg %p412
        $region91: #{tpu_custom_call.1} parent=84 // pred_check_branch
          %415 = sbr.rel (%p413) target = $region93
        $region92: #{tpu_custom_call.1} parent=84 // pred_region
          %s416 = smul.u32 %s32, 8
          loop: start=0, step=1, limit=8
          $region94: #{tpu_custom_call.1} parent=92 // loop_pre_header
            _
          $region95: #{tpu_custom_call.1} parent=92 // loop_header
            %s418 = sphi 0, %s422
            %p419 = scmp.ge.s32.totalorder %s418, 8
          $region96: #{tpu_custom_call.1} parent=92 // loop_header_branch
            %421 = sbr.rel (%p419) target = $region100
          $region97: #{tpu_custom_call.1} parent=92 // loop_body
            %s423 = sadd.s32 %s416, %s418
            %s424 = smul.u32 %s423, 4
            %s425 = sld [smem:[#allocation7 + %s424]]
            %s426 = scalar_lea.vmem %s1, %s425
            %v427 = vld [vmem:[%s426] sm:$0x1]
            %s428 = scalar_lea.vmem [#allocation2], %s418
            %vm429 = vcmask 253952
            %430 = vst.msk [vmem:[%s428] sm:$0x1] %vm429, %v427
            %s431 = sadd.s32 %s424, 1
            %s432 = sld [smem:[#allocation7 + %s431]]
            %s433 = scalar_lea.vmem %s1, %s432
            %v434 = vld [vmem:[%s433] sm:$0x1]
            %s435 = sadd.s32 %s418, 8
            %s436 = scalar_lea.vmem [#allocation2], %s435
            %437 = vst.msk [vmem:[%s436] sm:$0x1] %vm429, %v434
            %s438 = sadd.s32 %s424, 2
            %s439 = sld [smem:[#allocation7 + %s438]]
            %s440 = scalar_lea.vmem %s1, %s439
            %v441 = vld [vmem:[%s440] sm:$0x1]
            %s442 = sadd.s32 %s418, 16
            %s443 = scalar_lea.vmem [#allocation2], %s442
            %444 = vst.msk [vmem:[%s443] sm:$0x1] %vm429, %v441
            %s445 = sadd.s32 %s424, 3
            %s446 = sld [smem:[#allocation7 + %s445]]
            %s447 = scalar_lea.vmem %s1, %s446
            %v448 = vld [vmem:[%s447] sm:$0x1]
            %s449 = sadd.s32 %s418, 24
            %s450 = scalar_lea.vmem [#allocation2], %s449
            %451 = vst.msk [vmem:[%s450] sm:$0x1] %vm429, %v448
          $region98: #{tpu_custom_call.1} parent=92 // loop_footer
            %s422 = sadd.s32 1, %s418
          $region99: #{tpu_custom_call.1} parent=92 // loop_footer_branch
            %417 = sbr.rel target = $region95
          $region100: #{tpu_custom_call.1} parent=92 // loop_exit
            _
          %v452 = vld [vmem:[#allocation2] sm:$0xff]
          %v453 = vld [vmem:[%s2] sm:$0x1]
          %v454 = vlaneseq
          %v455 = vshrl.u32 %v454, 7
          %v456 = vsub.s32 0, %v455
          %v457 = vrot.slane %v453, %v456
          %v458 = vmul.f32 %v452, %v457
          %v459 = vpack.c.bf16 %v458, %v458
          %v460 = vld [vmem:[%s3] sm:$0xf]
          %v461 = vld [vmem:[%s3 + $0x4] sm:$0xf]
          %v462 = vld [vmem:[%s3 + $0x8] sm:$0xf]
          %v463 = vld [vmem:[%s3 + $0xc] sm:$0xf]
          %v464 = vld [vmem:[#allocation2 + $0x8] sm:$0xff]
          %v465 = vld [vmem:[%s2 + $0x1] sm:$0x1]
          %v466 = vlaneseq
          %v467 = vshrl.u32 %v466, 7
          %v468 = vsub.s32 0, %v467
          %v469 = vrot.slane %v465, %v468
          %v470 = vmul.f32 %v464, %v469
          %v471 = vpack.c.bf16 %v470, %v470
          %v472 = vld [vmem:[%s3 + $0x10] sm:$0xf]
          %v473 = vld [vmem:[%s3 + $0x14] sm:$0xf]
          %v474 = vld [vmem:[%s3 + $0x18] sm:$0xf]
          %v475 = vld [vmem:[%s3 + $0x1c] sm:$0xf]
          %v480 = vunpack.c.l.b16 %v472
          %v481 = vunpack.c.l.b16 %v473
          %v482 = vunpack.c.l.b16 %v474
          %v483 = vunpack.c.l.b16 %v475
          %v484 = vpack.c.b16 %v481, %v480
          %v485 = vpack.c.b16 %v483, %v482
          %vm488 = vcmask 261120
          %v490 = vsel %vm488, %v471, 0
          %492 = vmatprep.subr.bf16.mxu0 0
          %493 = vmatpush1.bf16.msra.mxu0 %v484
          %494 = vmatprep.subr.bf16.mxu0 0
          %495 = vmatpush1.bf16.msra.mxu0 %v485
          %496 = vmatprep.subr.bf16.mxu0 0
          %497 = vmatpush1.bf16.msra.mxu0 0
          %498 = vmatprep.subr.bf16.mxu0 0
          %499 = vmatpush1.bf16.msra.mxu0 0
          %500 = vmatprep.subr.bf16.mxu0 0
          %501 = vmatpush1.bf16.msra.mxu0 0
          %502 = vmatprep.subr.bf16.mxu0 0
          %503 = vmatpush1.bf16.msra.mxu0 0
          %504 = vmatprep.subr.bf16.mxu0 0
          %505 = vmatpush1.bf16.msra.mxu0 0
          %506 = vmatprep.subr.bf16.mxu0 0
          %507 = vmatpush1.bf16.msra.mxu0 0
          %508 = vmatprep.subr.bf16.mxu0 0
          %509 = vmatpush1.bf16.msra.mxu0 0
          %510 = vmatprep.subr.bf16.mxu0 0
          %511 = vmatpush1.bf16.msra.mxu0 0
          %512 = vmatprep.subr.bf16.mxu0 0
          %513 = vmatpush1.bf16.msra.mxu0 0
          %514 = vmatprep.subr.bf16.mxu0 0
          %515 = vmatpush1.bf16.msra.mxu0 0
          %516 = vmatprep.subr.bf16.mxu0 0
          %517 = vmatpush1.bf16.msra.mxu0 0
          %518 = vmatprep.subr.bf16.mxu0 0
          %519 = vmatpush1.bf16.msra.mxu0 0
          %520 = vmatprep.subr.bf16.mxu0 0
          %521 = vmatpush1.bf16.msra.mxu0 0
          %522 = vmatprep.subr.bf16.mxu0 0
          %523 = vmatpush1.bf16.msra.mxu0 0
          %524 = vmatprep.mubr.bf16.mxu0 0
          %525 = vmatmul.mubr.bf16.gmra.mrb[0].mxu0 %v490
          %v526 = vpop.f32.mrb[0].mxu0
          %v527 = vadd.f32 0.0, %v526
          %v528 = vpop.f32.mrb[0].mxu0
          %v529 = vpop.f32.mrb[0].mxu0
          %v530 = vpop.f32.mrb[0].mxu0
          %531 = vdwg.mxu0
          %v536 = vunpack.c.l.b16 %v460
          %v537 = vunpack.c.l.b16 %v461
          %v538 = vunpack.c.l.b16 %v462
          %v539 = vunpack.c.l.b16 %v463
          %v540 = vpack.c.b16 %v537, %v536
          %v541 = vpack.c.b16 %v539, %v538
          %v545 = vsel %vm488, %v459, 0
          %547 = vmatprep.subr.bf16.mxu0 0
          %548 = vmatpush1.bf16.msra.mxu0 %v540
          %549 = vmatprep.subr.bf16.mxu0 0
          %550 = vmatpush1.bf16.msra.mxu0 %v541
          %551 = vmatprep.subr.bf16.mxu0 0
          %552 = vmatpush1.bf16.msra.mxu0 0
          %553 = vmatprep.subr.bf16.mxu0 0
          %554 = vmatpush1.bf16.msra.mxu0 0
          %555 = vmatprep.subr.bf16.mxu0 0
          %556 = vmatpush1.bf16.msra.mxu0 0
          %557 = vmatprep.subr.bf16.mxu0 0
          %558 = vmatpush1.bf16.msra.mxu0 0
          %559 = vmatprep.subr.bf16.mxu0 0
          %560 = vmatpush1.bf16.msra.mxu0 0
          %561 = vmatprep.subr.bf16.mxu0 0
          %562 = vmatpush1.bf16.msra.mxu0 0
          %563 = vmatprep.subr.bf16.mxu0 0
          %564 = vmatpush1.bf16.msra.mxu0 0
          %565 = vmatprep.subr.bf16.mxu0 0
          %566 = vmatpush1.bf16.msra.mxu0 0
          %567 = vmatprep.subr.bf16.mxu0 0
          %568 = vmatpush1.bf16.msra.mxu0 0
          %569 = vmatprep.subr.bf16.mxu0 0
          %570 = vmatpush1.bf16.msra.mxu0 0
          %571 = vmatprep.subr.bf16.mxu0 0
          %572 = vmatpush1.bf16.msra.mxu0 0
          %573 = vmatprep.subr.bf16.mxu0 0
          %574 = vmatpush1.bf16.msra.mxu0 0
          %575 = vmatprep.subr.bf16.mxu0 0
          %576 = vmatpush1.bf16.msra.mxu0 0
          %577 = vmatprep.subr.bf16.mxu0 0
          %578 = vmatpush1.bf16.msra.mxu0 0
          %579 = vmatprep.mubr.bf16.mxu0 0
          %580 = vmatmul.mubr.bf16.gmra.mrb[0].mxu0 %v545
          %v581 = vpop.f32.mrb[0].mxu0
          %v582 = vadd.f32 %v527, %v581
          %v583 = vpop.f32.mrb[0].mxu0
          %v584 = vpop.f32.mrb[0].mxu0
          %v585 = vpop.f32.mrb[0].mxu0
          %586 = vdwg.mxu0
          %v587 = vld [vmem:[#allocation2 + $0x10] sm:$0xff]
          %v588 = vld [vmem:[%s2 + $0x2] sm:$0x1]
          %v589 = vlaneseq
          %v590 = vshrl.u32 %v589, 7
          %v591 = vsub.s32 0, %v590
          %v592 = vrot.slane %v588, %v591
          %v593 = vmul.f32 %v587, %v592
          %v594 = vpack.c.bf16 %v593, %v593
          %v595 = vld [vmem:[%s3 + $0x20] sm:$0xf]
          %v596 = vld [vmem:[%s3 + $0x24] sm:$0xf]
          %v597 = vld [vmem:[%s3 + $0x28] sm:$0xf]
          %v598 = vld [vmem:[%s3 + $0x2c] sm:$0xf]
          %v603 = vunpack.c.l.b16 %v595
          %v604 = vunpack.c.l.b16 %v596
          %v605 = vunpack.c.l.b16 %v597
          %v606 = vunpack.c.l.b16 %v598
          %v607 = vpack.c.b16 %v604, %v603
          %v608 = vpack.c.b16 %v606, %v605
          %v612 = vsel %vm488, %v594, 0
          %614 = vmatprep.subr.bf16.mxu0 0
          %615 = vmatpush1.bf16.msra.mxu0 %v607
          %616 = vmatprep.subr.bf16.mxu0 0
          %617 = vmatpush1.bf16.msra.mxu0 %v608
          %618 = vmatprep.subr.bf16.mxu0 0
          %619 = vmatpush1.bf16.msra.mxu0 0
          %620 = vmatprep.subr.bf16.mxu0 0
          %621 = vmatpush1.bf16.msra.mxu0 0
          %622 = vmatprep.subr.bf16.mxu0 0
          %623 = vmatpush1.bf16.msra.mxu0 0
          %624 = vmatprep.subr.bf16.mxu0 0
          %625 = vmatpush1.bf16.msra.mxu0 0
          %626 = vmatprep.subr.bf16.mxu0 0
          %627 = vmatpush1.bf16.msra.mxu0 0
          %628 = vmatprep.subr.bf16.mxu0 0
          %629 = vmatpush1.bf16.msra.mxu0 0
          %630 = vmatprep.subr.bf16.mxu0 0
          %631 = vmatpush1.bf16.msra.mxu0 0
          %632 = vmatprep.subr.bf16.mxu0 0
          %633 = vmatpush1.bf16.msra.mxu0 0
          %634 = vmatprep.subr.bf16.mxu0 0
          %635 = vmatpush1.bf16.msra.mxu0 0
          %636 = vmatprep.subr.bf16.mxu0 0
          %637 = vmatpush1.bf16.msra.mxu0 0
          %638 = vmatprep.subr.bf16.mxu0 0
          %639 = vmatpush1.bf16.msra.mxu0 0
          %640 = vmatprep.subr.bf16.mxu0 0
          %641 = vmatpush1.bf16.msra.mxu0 0
          %642 = vmatprep.subr.bf16.mxu0 0
          %643 = vmatpush1.bf16.msra.mxu0 0
          %644 = vmatprep.subr.bf16.mxu0 0
          %645 = vmatpush1.bf16.msra.mxu0 0
          %646 = vmatprep.mubr.bf16.mxu0 0
          %647 = vmatmul.mubr.bf16.gmra.mrb[0].mxu0 %v612
          %v648 = vpop.f32.mrb[0].mxu0
          %v649 = vadd.f32 0.0, %v648
          %v650 = vpop.f32.mrb[0].mxu0
          %v651 = vpop.f32.mrb[0].mxu0
          %v652 = vpop.f32.mrb[0].mxu0
          %653 = vdwg.mxu0
          %v654 = vadd.f32 %v582, %v649
          %v655 = vld [vmem:[#allocation2 + $0x18] sm:$0xff]
          %v656 = vld [vmem:[%s2 + $0x3] sm:$0x1]
          %v657 = vlaneseq
          %v658 = vshrl.u32 %v657, 7
          %v659 = vsub.s32 0, %v658
          %v660 = vrot.slane %v656, %v659
          %v661 = vmul.f32 %v655, %v660
          %v662 = vpack.c.bf16 %v661, %v661
          %v663 = vld [vmem:[%s3 + $0x30] sm:$0xf]
          %v664 = vld [vmem:[%s3 + $0x34] sm:$0xf]
          %v665 = vld [vmem:[%s3 + $0x38] sm:$0xf]
          %v666 = vld [vmem:[%s3 + $0x3c] sm:$0xf]
          %v671 = vunpack.c.l.b16 %v663
          %v672 = vunpack.c.l.b16 %v664
          %v673 = vunpack.c.l.b16 %v665
          %v674 = vunpack.c.l.b16 %v666
          %v675 = vpack.c.b16 %v672, %v671
          %v676 = vpack.c.b16 %v674, %v673
          %v680 = vsel %vm488, %v662, 0
          %682 = vmatprep.subr.bf16.mxu0 0
          %683 = vmatpush1.bf16.msra.mxu0 %v675
          %684 = vmatprep.subr.bf16.mxu0 0
          %685 = vmatpush1.bf16.msra.mxu0 %v676
          %686 = vmatprep.subr.bf16.mxu0 0
          %687 = vmatpush1.bf16.msra.mxu0 0
          %688 = vmatprep.subr.bf16.mxu0 0
          %689 = vmatpush1.bf16.msra.mxu0 0
          %690 = vmatprep.subr.bf16.mxu0 0
          %691 = vmatpush1.bf16.msra.mxu0 0
          %692 = vmatprep.subr.bf16.mxu0 0
          %693 = vmatpush1.bf16.msra.mxu0 0
          %694 = vmatprep.subr.bf16.mxu0 0
          %695 = vmatpush1.bf16.msra.mxu0 0
          %696 = vmatprep.subr.bf16.mxu0 0
          %697 = vmatpush1.bf16.msra.mxu0 0
          %698 = vmatprep.subr.bf16.mxu0 0
          %699 = vmatpush1.bf16.msra.mxu0 0
          %700 = vmatprep.subr.bf16.mxu0 0
          %701 = vmatpush1.bf16.msra.mxu0 0
          %702 = vmatprep.subr.bf16.mxu0 0
          %703 = vmatpush1.bf16.msra.mxu0 0
          %704 = vmatprep.subr.bf16.mxu0 0
          %705 = vmatpush1.bf16.msra.mxu0 0
          %706 = vmatprep.subr.bf16.mxu0 0
          %707 = vmatpush1.bf16.msra.mxu0 0
          %708 = vmatprep.subr.bf16.mxu0 0
          %709 = vmatpush1.bf16.msra.mxu0 0
          %710 = vmatprep.subr.bf16.mxu0 0
          %711 = vmatpush1.bf16.msra.mxu0 0
          %712 = vmatprep.subr.bf16.mxu0 0
          %713 = vmatpush1.bf16.msra.mxu0 0
          %714 = vmatprep.mubr.bf16.mxu0 0
          %715 = vmatmul.mubr.bf16.gmra.mrb[0].mxu0 %v680
          %v716 = vpop.f32.mrb[0].mxu0
          %v717 = vadd.f32 0.0, %v716
          %v718 = vpop.f32.mrb[0].mxu0
          %v719 = vpop.f32.mrb[0].mxu0
          %v720 = vpop.f32.mrb[0].mxu0
          %721 = vdwg.mxu0
          %v722 = vadd.f32 %v654, %v717
          %v723 = vld [vmem:[%s4] sm:$0x1]
          %v725 = vlaneseq
          %v726 = vshrl.u32 %v725, 7
          %v727 = vsub.s32 0, %v726
          %v728 = vrot.slane %v723, %v727
          %v730 = vadd.f32 %v722, %v728
          %v731 = vtanh.pop %v730
          %v732 = vld [vmem:[%s5] sm:$0x1]
          %v734 = vlaneseq
          %v735 = vshrl.u32 %v734, 7
          %v736 = vsub.s32 0, %v735
          %v737 = vrot.slane %v732, %v736
          %v739 = vmul.f32 %v731, %v737
          %v740 = vpack.c.bf16 %v739, %v739
          %741 = vst [vmem:[#allocation3] sm:$0xf] %v740
          %vm742 = vcmask 7168
          %743 = vst.msk [vmem:[#allocation4] sm:$0xff] %vm742, -inf
          %744 = vst.msk [vmem:[#allocation5] sm:$0xff] %vm742, 0.0
        $region93: #{tpu_custom_call.1} parent=84 // pred_fallthru
          _
        %v745 = vld [vmem:[#allocation3] sm:$0xf]
        %v746 = vld [vmem:[%s376] sm:$0xf]
        %v747 = vld [vmem:[%s376 + $0x4] sm:$0xf]
        %v748 = vld [vmem:[%s376 + $0x8] sm:$0xf]
        %v749 = vld [vmem:[%s376 + $0xc] sm:$0xf]
        %v750 = vld [vmem:[%s376 + $0x10] sm:$0xf]
        %v751 = vld [vmem:[%s376 + $0x14] sm:$0xf]
        %v752 = vld [vmem:[%s376 + $0x18] sm:$0xf]
        %v753 = vld [vmem:[%s376 + $0x1c] sm:$0xf]
        %v754 = vld [vmem:[%s376 + $0x20] sm:$0xf]
        %v755 = vld [vmem:[%s376 + $0x24] sm:$0xf]
        %v756 = vld [vmem:[%s376 + $0x28] sm:$0xf]
        %v757 = vld [vmem:[%s376 + $0x2c] sm:$0xf]
        %v758 = vld [vmem:[%s376 + $0x30] sm:$0xf]
        %v759 = vld [vmem:[%s376 + $0x34] sm:$0xf]
        %v760 = vld [vmem:[%s376 + $0x38] sm:$0xf]
        %v761 = vld [vmem:[%s376 + $0x3c] sm:$0xf]
        %v762 = vld [vmem:[%s410] sm:$0x1]
        %v764 = vlaneseq
        %v765 = vshrl.u32 %v764, 7
        %v766 = vsub.s32 0, %v765
        %v767 = vrot.slane %v762, %v766
        %v785 = vunpack.c.l.b16 %v746
        %v786 = vunpack.c.l.b16 %v747
        %v787 = vunpack.c.l.b16 %v748
        %v788 = vunpack.c.l.b16 %v749
        %v789 = vunpack.c.l.b16 %v750
        %v790 = vunpack.c.l.b16 %v751
        %v791 = vunpack.c.l.b16 %v752
        %v792 = vunpack.c.l.b16 %v753
        %v793 = vunpack.c.l.b16 %v754
        %v794 = vunpack.c.l.b16 %v755
        %v795 = vunpack.c.l.b16 %v756
        %v796 = vunpack.c.l.b16 %v757
        %v797 = vunpack.c.l.b16 %v758
        %v798 = vunpack.c.l.b16 %v759
        %v799 = vunpack.c.l.b16 %v760
        %v800 = vunpack.c.l.b16 %v761
        %v801 = vpack.c.b16 %v786, %v785
        %v802 = vpack.c.b16 %v788, %v787
        %v803 = vpack.c.b16 %v790, %v789
        %v804 = vpack.c.b16 %v792, %v791
        %v805 = vpack.c.b16 %v794, %v793
        %v806 = vpack.c.b16 %v796, %v795
        %v807 = vpack.c.b16 %v798, %v797
        %v808 = vpack.c.b16 %v800, %v799
        %817 = vmatprep.subr.bf16.mxu0 0
        %818 = vmatpush1.bf16.msra.mxu0 %v801
        %819 = vmatprep.subr.bf16.mxu0 0
        %820 = vmatpush1.bf16.msra.mxu0 %v802
        %821 = vmatprep.subr.bf16.mxu0 0
        %822 = vmatpush1.bf16.msra.mxu0 %v803
        %823 = vmatprep.subr.bf16.mxu0 0
        %824 = vmatpush1.bf16.msra.mxu0 %v804
        %825 = vmatprep.subr.bf16.mxu0 0
        %826 = vmatpush1.bf16.msra.mxu0 %v805
        %827 = vmatprep.subr.bf16.mxu0 0
        %828 = vmatpush1.bf16.msra.mxu0 %v806
        %829 = vmatprep.subr.bf16.mxu0 0
        %830 = vmatpush1.bf16.msra.mxu0 %v807
        %831 = vmatprep.subr.bf16.mxu0 0
        %832 = vmatpush1.bf16.msra.mxu0 %v808
        %833 = vmatprep.subr.bf16.mxu0 0
        %834 = vmatpush1.bf16.msra.mxu0 0
        %835 = vmatprep.subr.bf16.mxu0 0
        %836 = vmatpush1.bf16.msra.mxu0 0
        %837 = vmatprep.subr.bf16.mxu0 0
        %838 = vmatpush1.bf16.msra.mxu0 0
        %839 = vmatprep.subr.bf16.mxu0 0
        %840 = vmatpush1.bf16.msra.mxu0 0
        %841 = vmatprep.subr.bf16.mxu0 0
        %842 = vmatpush1.bf16.msra.mxu0 0
        %843 = vmatprep.subr.bf16.mxu0 0
        %844 = vmatpush1.bf16.msra.mxu0 0
        %845 = vmatprep.subr.bf16.mxu0 0
        %846 = vmatpush1.bf16.msra.mxu0 0
        %847 = vmatprep.subr.bf16.mxu0 0
        %848 = vmatpush1.bf16.msra.mxu0 0
        %849 = vmatprep.mubr.bf16.mxu0 0
        %850 = vmatmul.mubr.bf16.gmra.mrb[0].mxu0 %v745
        %v851 = vpop.f32.mrb[0].mxu0
        %v852 = vadd.f32 %v767, %v851
        %v853 = vpop.f32.mrb[0].mxu0
        %v854 = vpop.f32.mrb[0].mxu0
        %v855 = vpop.f32.mrb[0].mxu0
        %856 = vdwg.mxu0
        %v857 = vld [vmem:[#allocation4] sm:$0xff]
        %858 = vmax.xlane.f32.xlu0 %v852
        %v859 = vpop.xlane.xlu0 %858
        %v860 = vmax.f32 %v857, %v859
        %v861 = vld [vmem:[#allocation5] sm:$0xff]
        %v862 = vsub.f32 %v857, %v860
        %v863 = vmul.f32 %v862, 1.442695
        %v864 = vpow.pop %v863
        %v865 = vmul.f32 %v861, %v864
        %867 = vset.pattern.permute.xlu0 0
        %868 = vperm.xlu0 %867, %v860
        %v869 = vpop.permute.xlu0 %868
        %v871 = vsub.f32 %v852, %v869
        %v872 = vmul.f32 %v871, 1.442695
        %v873 = vpow.pop %v872
        %874 = vadd.xlane.f32.xlu0 %v873
        %v875 = vpop.xlane.xlu0 %874
        %v876 = vadd.f32 %v865, %v875
        %vm877 = vcmask 7168
        %878 = vst.msk [vmem:[#allocation5] sm:$0xff] %vm877, %v876
        %879 = vst.msk [vmem:[#allocation4] sm:$0xff] %vm877, %v860
        %s880 = smul.u32 %s33, 128
        %s881 = sshra.s32 %s880, 7
        %s882 = sand.u32 %s880, 127
        %s883 = smul.addr %s881, 8
        %s884 = scalar_lea.vmem %s407, %s883 [#allocation9]
        %885 = vst [vmem:[%s884] sm:$0xff] %v852
        %p886 = scmp.eq.s32.totalorder %s33, 1
        // Predicated region
        $region101: #{tpu_custom_call.1} parent=84 // pred_check
          %p887 = pneg %p886
        $region102: #{tpu_custom_call.1} parent=84 // pred_check_branch
          %889 = sbr.rel (%p887) target = $region104
        $region103: #{tpu_custom_call.1} parent=84 // pred_region
          %v890 = vld [vmem:[#allocation4] sm:$0xff]
          %v891 = vld [vmem:[#allocation5] sm:$0xff]
          %v892 = vlog2.pop %v891
          %v893 = vmul.f32 %v892, 0.6931472
          %v894 = vadd.f32 %v890, %v893
          %v895 = vld [vmem:[%s407] sm:$0xff]
          %v896 = vld [vmem:[%s407 + $0x8] sm:$0xff]
          %898 = vset.pattern.permute.xlu0 0
          %899 = vperm.xlu0 %898, %v894
          %v900 = vpop.permute.xlu0 %899
          %v902 = vsub.f32 %v895, %v900
          %v903 = vsub.f32 %v896, %v900
          %904 = vst [vmem:[%s407] sm:$0xff] %v902
          %905 = vst [vmem:[%s407 + $0x8] sm:$0xff] %v903
        $region104: #{tpu_custom_call.1} parent=84 // pred_fallthru
          _
        %s906 = sand.u32 %s205, 1
        %s907 = scalar_lea.sflag [#allocation10], %s906
        %s908 = sand.u32 %s205, 1
        %s909 = smul.addr %s908, 16
        %s910 = scalar_lea.vmem [#allocation9], %s909
        // Predicated region
        $region105: #{tpu_custom_call.1} parent=84 // pred_check
          %p911 = pneg %p215
        $region106: #{tpu_custom_call.1} parent=84 // pred_check_branch
          %913 = sbr.rel (%p911) target = $region108
        $region107: #{tpu_custom_call.1} parent=84 // pred_region
          %s915 = ssub.s32 256, 256
          %916 = vsyncadd %s907, %s915
          %s917 = smul.addr %s32, 2
          %s918 = smul.addr %s917, 128
          %s919 = scalar_lea.hbm %s8, %s918
          %s921 = sshll.u32 %s910, 4
          %s922 = int_to_ptr.vmem [resolvable:$true] %s921
          %924 = dma.vmem_to_hbm [thread:$0]  %s922, 256, %s919, %s907
        $region108: #{tpu_custom_call.1} parent=84 // pred_fallthru
          _
      $region85: #{tpu_custom_call.1} parent=5 // pred_fallthru
        _
      %p925 = scmp.le.s32.totalorder 2, %s23
      // Predicated region
      $region109: #{tpu_custom_call.1} parent=5 // pred_check
        %p926 = pneg %p925
      $region110: #{tpu_custom_call.1} parent=5 // pred_check_branch
        %928 = sbr.rel (%p926) target = $region112
      $region111: #{tpu_custom_call.1} parent=5 // pred_region
        %s929 = ssub.s32 %s23, 2
        // Predicated region
        $region113: #{tpu_custom_call.1} parent=111 // pred_check
          %p930 = pneg %p221
        $region114: #{tpu_custom_call.1} parent=111 // pred_check_branch
          %932 = sbr.rel (%p930) target = $region116
        $region115: #{tpu_custom_call.1} parent=111 // pred_region
          %s933 = sand.u32 %s206, 1
          %s934 = scalar_lea.sflag [#allocation10], %s933
          %s935 = sand.u32 %s206, 1
          %s936 = smul.addr %s935, 16
          %s937 = scalar_lea.vmem [#allocation9], %s936
          %938 = dma.done %s934, 256
        $region116: #{tpu_custom_call.1} parent=111 // pred_fallthru
          _
      $region112: #{tpu_custom_call.1} parent=5 // pred_fallthru
        _
    $region6: #{tpu_custom_call.1} parent=1 // loop_footer
      %s27 = sadd.s32 1, %s23
    $region7: #{tpu_custom_call.1} parent=1 // loop_footer_branch
      %22 = sbr.rel target = $region3
    $region8: #{tpu_custom_call.1} parent=1 // loop_exit
      _
    %939 = vsyncpa [#allocation10], 1
    %s940 = scalar_lea.sflag [#allocation10], 1
    %941 = vsyncpa %s940, 1

</llo_original>
